<compile_context>
chip_gen: v7x
topology: tpu7x:2x2x1
jax: 0.10.0
libtpu: 0.0.40
codegen_flags: <defaults>
</compile_context>

<pallas_src>
import jax
import jax.numpy as jnp
from jax.experimental import pallas as pl
from jax.experimental.pallas import tpu as pltpu


def _pick_spatial_tile(S, max_tile=65536):
    """Largest multiple of 128 that divides S and is <= max_tile; else the full extent."""
    if S % 128 != 0:
        return S  # full-extent minor block dim is always legal
    for k in range(min(S // 128, max_tile // 128), 0, -1):
        if S % (128 * k) == 0:
            return 128 * k
    return S


def _make_tta_kernel(Cin, Cout):
    def kernel(x_ref, w_ref, b_ref, o_ref):
        # x_ref : (Cin, TILE_S)  VMEM  -- one image's spatial tile; channels on sublanes,
        #                                 flattened H*W on the lane axis (lane-dense).
        # w_ref : (Cin, Cout)    SMEM  -- 1x1 conv weights (scalars).
        # b_ref : (Cout,)        SMEM  -- conv bias (scalars).
        # o_ref : (Cout, TILE_S) VMEM
        x = x_ref[...]

        # Hoist all SMEM scalar reads out of the FMA loops (read once per tile).
        w = [[w_ref[ci, co] for co in range(Cout)] for ci in range(Cin)]
        b = [b_ref[co] for co in range(Cout)]

        # Pointwise conv as Cin*Cout scalar-broadcast FMAs on the VPU (no MXU, no kron).
        rows = []
        for co in range(Cout):
            acc = x[0:1, :] * w[0][co]
            for ci in range(1, Cin):
                acc = acc + x[ci:ci + 1, :] * w[ci][co]
            rows.append(acc + b[co])
        y = jnp.concatenate(rows, axis=0)  # (Cout, TILE_S)

        # TTA merge: identity / hflip / vflip branches are bit-identical around a pointwise
        # model (flip . conv1x1 . flip == conv1x1), so mean(y, y, y) == y.
        # Single full-block, lane-dense store.
        o_ref[...] = y.astype(o_ref.dtype)

    return kernel


def segmentation_tta_forward(x_nchw, conv_weight, conv_bias):
    """TTA (identity / hflip / vflip, mean merge) around a 1x1-conv segmentation head."""
    N, Cin, H, W = x_nchw.shape
    Cout = conv_weight.shape[1]
    S = H * W
    tile_s = _pick_spatial_tile(S)
    num_tiles = S // tile_s

    x_flat = x_nchw.reshape(N, Cin, S)  # contiguous -> free metadata reshape
    kernel = _make_tta_kernel(Cin, Cout)

    out_flat = pl.pallas_call(
        kernel,
        out_shape=jax.ShapeDtypeStruct((N, Cout, S), jnp.float32),
        grid=(N, num_tiles),
        in_specs=[
            pl.BlockSpec((None, Cin, tile_s), lambda n, s: (n, 0, s)),   # image spatial tile
            pl.BlockSpec(memory_space=pltpu.MemorySpace.SMEM),           # conv weight (Cin, Cout)
            pl.BlockSpec(memory_space=pltpu.MemorySpace.SMEM),           # conv bias  (Cout,)
        ],
        out_specs=pl.BlockSpec((None, Cout, tile_s), lambda n, s: (n, 0, s)),
        compiler_params=pltpu.CompilerParams(
            dimension_semantics=("parallel", "parallel")),
    )(x_flat,
      conv_weight.astype(jnp.float32),
      conv_bias.astype(jnp.float32))

    return out_flat.reshape(N, Cout, H, W)


def reference_tta(x_nchw, conv_weight, conv_bias):
    """Pure-JAX reference that mirrors the PyTorch forward loop exactly (real flips, mean merge)."""
    outs = []
    for t in range(3):
        xi = x_nchw
        if t == 1:
            xi = xi[:, :, :, ::-1]   # horizontal flip (W)
        elif t == 2:
            xi = xi[:, :, ::-1, :]   # vertical flip (H)
        y = jnp.einsum('nchw,co->nohw', xi, conv_weight) + conv_bias[None, :, None, None]
        if t == 1:
            y = y[:, :, :, ::-1]
        elif t == 2:
            y = y[:, :, ::-1, :]
        outs.append(y)
    return sum(outs) / 3.0


if __name__ == "__main__":
    key = jax.random.PRNGKey(0)
    k_x, k_w, k_b = jax.random.split(key, 3)

    N, Cin, H, W, Cout = 2, 4, 16, 16, 2
    x = jax.random.normal(k_x, (N, Cin, H, W), dtype=jnp.float32)
    conv_weight = 0.1 * jax.random.normal(k_w, (Cin, Cout), dtype=jnp.float32)
    conv_bias = 0.1 * jax.random.normal(k_b, (Cout,), dtype=jnp.float32)

    out = segmentation_tta_forward(x, conv_weight, conv_bias)
    out = jax.block_until_ready(out)

    ref = reference_tta(x, conv_weight, conv_bias)
    assert out.shape == (N, Cout, H, W), out.shape
    if not jnp.allclose(out, ref, rtol=1e-4, atol=1e-4):
        raise AssertionError("Pallas TTA kernel does not match JAX reference")

    print("KERNEL_OK")
</pallas_src>

<mosaic_0001>
module attributes {stable_mosaic.version = 11 : i64} {
  func.func @kernel(%arg0: i32, %arg1: i32, %arg2: memref<1x4x256xf32, #tpu.memory_space<vmem>>, %arg3: memref<4x2xf32, #tpu.memory_space<smem>>, %arg4: memref<2xf32, #tpu.memory_space<smem>>, %arg5: memref<1x2x256xf32, #tpu.memory_space<vmem>>) attributes {dimension_semantics = [#tpu.dimension_semantics<parallel>, #tpu.dimension_semantics<parallel>], iteration_bounds = array<i64: 2, 1>, scalar_prefetch = 0 : i64, scratch_operands = 0 : i64, tpu.core_type = #tpu.core_type<tc>, window_params = [{transform_indices = @transform_0, window_bounds = array<i64: 1, 4, 256>}, {transform_indices = @transform_1, window_bounds = array<i64: 4, 2>}, {transform_indices = @transform_2, window_bounds = array<i64: 2>}, {transform_indices = @transform_3, window_bounds = array<i64: 1, 2, 256>}]} {
    %c0 = arith.constant 0 : index
    %c0_0 = arith.constant 0 : index
    %c0_1 = arith.constant 0 : index
    %0 = vector.load %arg2[%c0, %c0_0, %c0_1] : memref<1x4x256xf32, #tpu.memory_space<vmem>>, vector<1x4x256xf32>
    %1 = vector.shape_cast %0 : vector<1x4x256xf32> to vector<4x256xf32>
    %c0_2 = arith.constant 0 : index
    %c0_3 = arith.constant 0 : index
    %2 = memref.load %arg3[%c0_2, %c0_3] : memref<4x2xf32, #tpu.memory_space<smem>>
    %c0_4 = arith.constant 0 : index
    %c1 = arith.constant 1 : index
    %3 = memref.load %arg3[%c0_4, %c1] : memref<4x2xf32, #tpu.memory_space<smem>>
    %c1_5 = arith.constant 1 : index
    %c0_6 = arith.constant 0 : index
    %4 = memref.load %arg3[%c1_5, %c0_6] : memref<4x2xf32, #tpu.memory_space<smem>>
    %c1_7 = arith.constant 1 : index
    %c1_8 = arith.constant 1 : index
    %5 = memref.load %arg3[%c1_7, %c1_8] : memref<4x2xf32, #tpu.memory_space<smem>>
    %c2 = arith.constant 2 : index
    %c0_9 = arith.constant 0 : index
    %6 = memref.load %arg3[%c2, %c0_9] : memref<4x2xf32, #tpu.memory_space<smem>>
    %c2_10 = arith.constant 2 : index
    %c1_11 = arith.constant 1 : index
    %7 = memref.load %arg3[%c2_10, %c1_11] : memref<4x2xf32, #tpu.memory_space<smem>>
    %c3 = arith.constant 3 : index
    %c0_12 = arith.constant 0 : index
    %8 = memref.load %arg3[%c3, %c0_12] : memref<4x2xf32, #tpu.memory_space<smem>>
    %c3_13 = arith.constant 3 : index
    %c1_14 = arith.constant 1 : index
    %9 = memref.load %arg3[%c3_13, %c1_14] : memref<4x2xf32, #tpu.memory_space<smem>>
    %c0_15 = arith.constant 0 : index
    %10 = memref.load %arg4[%c0_15] : memref<2xf32, #tpu.memory_space<smem>>
    %c1_16 = arith.constant 1 : index
    %11 = memref.load %arg4[%c1_16] : memref<2xf32, #tpu.memory_space<smem>>
    %12 = vector.extract_strided_slice %1 {offsets = [0, 0], sizes = [1, 256], strides = [1, 1]} : vector<4x256xf32> to vector<1x256xf32>
    %13 = vector.broadcast %2 : f32 to vector<1x256xf32>
    %14 = arith.mulf %12, %13 : vector<1x256xf32>
    %15 = vector.extract_strided_slice %1 {offsets = [1, 0], sizes = [1, 256], strides = [1, 1]} : vector<4x256xf32> to vector<1x256xf32>
    %16 = vector.broadcast %4 : f32 to vector<1x256xf32>
    %17 = arith.mulf %15, %16 : vector<1x256xf32>
    %18 = arith.addf %14, %17 : vector<1x256xf32>
    %19 = vector.extract_strided_slice %1 {offsets = [2, 0], sizes = [1, 256], strides = [1, 1]} : vector<4x256xf32> to vector<1x256xf32>
    %20 = vector.broadcast %6 : f32 to vector<1x256xf32>
    %21 = arith.mulf %19, %20 : vector<1x256xf32>
    %22 = arith.addf %18, %21 : vector<1x256xf32>
    %23 = vector.extract_strided_slice %1 {offsets = [3, 0], sizes = [1, 256], strides = [1, 1]} : vector<4x256xf32> to vector<1x256xf32>
    %24 = vector.broadcast %8 : f32 to vector<1x256xf32>
    %25 = arith.mulf %23, %24 : vector<1x256xf32>
    %26 = arith.addf %22, %25 : vector<1x256xf32>
    %27 = vector.broadcast %10 : f32 to vector<1x256xf32>
    %28 = arith.addf %26, %27 : vector<1x256xf32>
    %29 = vector.extract_strided_slice %1 {offsets = [0, 0], sizes = [1, 256], strides = [1, 1]} : vector<4x256xf32> to vector<1x256xf32>
    %30 = vector.broadcast %3 : f32 to vector<1x256xf32>
    %31 = arith.mulf %29, %30 : vector<1x256xf32>
    %32 = vector.extract_strided_slice %1 {offsets = [1, 0], sizes = [1, 256], strides = [1, 1]} : vector<4x256xf32> to vector<1x256xf32>
    %33 = vector.broadcast %5 : f32 to vector<1x256xf32>
    %34 = arith.mulf %32, %33 : vector<1x256xf32>
    %35 = arith.addf %31, %34 : vector<1x256xf32>
    %36 = vector.extract_strided_slice %1 {offsets = [2, 0], sizes = [1, 256], strides = [1, 1]} : vector<4x256xf32> to vector<1x256xf32>
    %37 = vector.broadcast %7 : f32 to vector<1x256xf32>
    %38 = arith.mulf %36, %37 : vector<1x256xf32>
    %39 = arith.addf %35, %38 : vector<1x256xf32>
    %40 = vector.extract_strided_slice %1 {offsets = [3, 0], sizes = [1, 256], strides = [1, 1]} : vector<4x256xf32> to vector<1x256xf32>
    %41 = vector.broadcast %9 : f32 to vector<1x256xf32>
    %42 = arith.mulf %40, %41 : vector<1x256xf32>
    %43 = arith.addf %39, %42 : vector<1x256xf32>
    %44 = vector.broadcast %11 : f32 to vector<1x256xf32>
    %45 = arith.addf %43, %44 : vector<1x256xf32>
    %46 = tpu.concatenate %28, %45 in 0 : vector<1x256xf32>, vector<1x256xf32> -> vector<2x256xf32>
    %c0_17 = arith.constant 0 : index
    %c0_18 = arith.constant 0 : index
    %c0_19 = arith.constant 0 : index
    %47 = vector.load %arg5[%c0_17, %c0_18, %c0_19] : memref<1x2x256xf32, #tpu.memory_space<vmem>>, vector<1x2x256xf32>
    %48 = vector.shape_cast %47 : vector<1x2x256xf32> to vector<2x256xf32>
    %49 = vector.shape_cast %46 : vector<2x256xf32> to vector<1x2x256xf32>
    tpu.vector_store %arg5[%c0_17, %c0_18, %c0_19], %49 {strides = array<i32>} : memref<1x2x256xf32, #tpu.memory_space<vmem>>, vector<1x2x256xf32>,
    return
  }
  func.func @transform_0(%arg0: i32, %arg1: i32) -> (i32, i32, i32) {
    %c0_i32 = arith.constant 0 : i32
    %c0_i32_0 = arith.constant 0 : i32
    return %arg0, %c0_i32, %arg1 : i32, i32, i32
  }
  func.func @transform_1(%arg0: i32, %arg1: i32) -> (i32, i32) {
    %c0_i32 = arith.constant 0 : i32
    %c0_i32_0 = arith.constant 0 : i32
    %c0_i32_1 = arith.constant 0 : i32
    return %c0_i32, %c0_i32_0 : i32, i32
  }
  func.func @transform_2(%arg0: i32, %arg1: i32) -> i32 {
    %c0_i32 = arith.constant 0 : i32
    %c0_i32_0 = arith.constant 0 : i32
    return %c0_i32 : i32
  }
  func.func @transform_3(%arg0: i32, %arg1: i32) -> (i32, i32, i32) {
    %c0_i32 = arith.constant 0 : i32
    %c0_i32_0 = arith.constant 0 : i32
    return %arg0, %c0_i32, %arg1 : i32, i32, i32
  }
}

</mosaic_0001>

<llo_original>
// kernel: tpu_custom_call.1
$region0: #{tpu_custom_call.1}
  #allocation0 [shape = 'u32[]', space=smem, size = 0x4, offset = 0x4, fixed_abs, tag = 'smem constant byte address 0x4 - core index']
  #allocation1 [shape = 'u32[144,128]{1,0:T(1,128)}', space=vmem, size = 0x12000, scoped, tag = 'internal scratch']
  %s0 = inlined_call_operand.hbm [shape: f32[2,4,256], index: 0, kind: input, shape index: {}]
  %s1 = inlined_call_operand.vmem [shape: f32[4,2], index: 1, kind: input, shape index: {}]
  %s2 = inlined_call_operand.vmem [shape: f32[2], index: 2, kind: input, shape index: {}]
  %s3 = inlined_call_operand.hbm [shape: f32[2,2,256], index: 3, kind: output, shape index: {}]
  %s4 = sld [smem:[#allocation0]]
  $region57: #{tpu_custom_call.1} parent=0
    _
  %s6 = ssub.s32 1, %s4
  %s7 = scalar_select 0, %s6, %s4
  $region1: #{tpu_custom_call.1} parent=0
    #allocation2 [shape = 'u8[8192]{0}', space=vmem, size = 0x2000, scoped, tag = 'input window, operand 0']
    #allocation3 [shape = 's32[2]{0}', space=sflag, size = 0x8, scoped, tag = 'scoped memory for tpu_custom_call.1']
    #allocation4 [shape = 's32[2]{0}', space=sflag, size = 0x8, scoped, tag = 'scoped memory for tpu_custom_call.1']
    #allocation5 [shape = 's32[2]{0}', space=sflag, size = 0x8, scoped, tag = 'scoped memory for tpu_custom_call.1']
    #allocation6 [shape = 'u8[2048]{0}', space=smem, size = 0x800, scoped, tag = 'input window, operand 1, single buffered']
    #allocation7 [shape = 'u8[512]{0}', space=smem, size = 0x200, scoped, tag = 'input window, operand 2, single buffered']
    #allocation8 [shape = 's32[1]{0}', space=sflag, size = 0x4, scoped, tag = 'scoped memory for tpu_custom_call.1']
    #allocation9 [shape = 'u8[4096]{0}', space=vmem, size = 0x1000, scoped, tag = 'output window, operand 0']
    %8 = vsyncpa [#allocation3], 0
    %s9 = scalar_lea.sflag [#allocation3], 1
    %10 = vsyncpa %s9, 0
    %11 = vsyncpa [#allocation5], 0
    %12 = vsyncpa [#allocation8], 0
    %13 = vsyncpa [#allocation4], 0
    %s14 = scalar_lea.sflag [#allocation4], 1
    %15 = vsyncpa %s14, 0
    loop: start=0, step=1, limit=4
    $region2: #{tpu_custom_call.1} parent=1 // loop_pre_header
      _
    $region3: #{tpu_custom_call.1} parent=1 // loop_header
      %s17 = sphi 0, %s21
      %p18 = scmp.ge.s32.totalorder %s17, 4
      %s24 = sphi 0, %s36
      %s25 = sphi 0, %s32
      %s26 = sphi 0, %s24
      %s27 = sphi 0, %s25
      %s28 = sphi 0, %s26
      %s29 = sphi 0, %s27
      %s41 = sphi 0, %s43
      %s44 = sphi 0, %s41
      %s45 = sphi 0, %s44
      %s61 = sphi 0, %s45
      %s65 = sphi 0, %s65
      %s67 = sphi 0, %s65
      %s68 = sphi 0, %s67
      %s82 = sphi 0, %s68
      %s86 = sphi 0, %s86
      %s88 = sphi 0, %s86
      %s89 = sphi 0, %s88
      %s103 = sphi 0, %s89
      %s111 = sphi 0, %s113
      %s114 = sphi 0, %s111
      %s115 = sphi 0, %s114
      %s131 = sphi 0, %s115
    $region4: #{tpu_custom_call.1} parent=1 // loop_header_branch
      %20 = sbr.rel (%p18) target = $region8
    $region5: #{tpu_custom_call.1} parent=1 // loop_body
      %s22 = ssub.s32 %s17, 1
      %s23 = ssub.s32 %s17, 2
      %s30 = sadd.s32 1, %s25
      %p31 = scmp.ge.s32.totalorder %s30, 1
      %s32 = scalar_select %p31, 0, %s30
      %s33 = sadd.s32 1, %s24
      %s34 = scalar_select %p31, %s33, %s24
      %p35 = scmp.ge.s32.totalorder %s34, 2
      %s36 = scalar_select %p35, 0, %s34
      %s37 = ssub.s32 %s24, %s36
      %s38 = ssub.s32 %s25, %s32
      %s39 = sor.u32 %s37, %s38
      %p40 = scmp.eq.s32.totalorder %s39, 0
      %s42 = sadd.s32 %s41, 1
      %s43 = scalar_select %p40, %s41, %s42
      %p46 = pneg %p40
      %p47 = scmp.eq.s32.totalorder %s17, 1
      %p48 = por %p46, %p47
      %p49 = scmp.ne.s32.totalorder %s41, %s44
      %p50 = scmp.eq.s32.totalorder %s17, 0
      %p51 = por %p49, %p50
      %p52 = scmp.ne.s32.totalorder %s41, %s44
      %p53 = scmp.eq.s32.totalorder %s22, 1
      %p54 = por %p52, %p53
      %p55 = scmp.ne.s32.totalorder %s44, %s45
      %p56 = scmp.eq.s32.totalorder %s22, 0
      %p57 = por %p55, %p56
      %p58 = scmp.ne.s32.totalorder %s44, %s45
      %p59 = scmp.eq.s32.totalorder %s23, 1
      %p60 = por %p58, %p59
      %p62 = scmp.ne.s32.totalorder %s45, %s61
      %p63 = scmp.eq.s32.totalorder %s23, 0
      %p64 = por %p62, %p63
      %s66 = sadd.s32 %s65, 1
      %p69 = scmp.eq.s32.totalorder %s17, 1
      %p70 = scmp.ne.s32.totalorder %s65, %s67
      %p71 = scmp.eq.s32.totalorder %s17, 0
      %p72 = por %p70, %p71
      %p73 = scmp.ne.s32.totalorder %s65, %s67
      %p74 = scmp.eq.s32.totalorder %s22, 1
      %p75 = por %p73, %p74
      %p76 = scmp.ne.s32.totalorder %s67, %s68
      %p77 = scmp.eq.s32.totalorder %s22, 0
      %p78 = por %p76, %p77
      %p79 = scmp.ne.s32.totalorder %s67, %s68
      %p80 = scmp.eq.s32.totalorder %s23, 1
      %p81 = por %p79, %p80
      %p83 = scmp.ne.s32.totalorder %s68, %s82
      %p84 = scmp.eq.s32.totalorder %s23, 0
      %p85 = por %p83, %p84
      %s87 = sadd.s32 %s86, 1
      %p90 = scmp.eq.s32.totalorder %s17, 1
      %p91 = scmp.ne.s32.totalorder %s86, %s88
      %p92 = scmp.eq.s32.totalorder %s17, 0
      %p93 = por %p91, %p92
      %p94 = scmp.ne.s32.totalorder %s86, %s88
      %p95 = scmp.eq.s32.totalorder %s22, 1
      %p96 = por %p94, %p95
      %p97 = scmp.ne.s32.totalorder %s88, %s89
      %p98 = scmp.eq.s32.totalorder %s22, 0
      %p99 = por %p97, %p98
      %p100 = scmp.ne.s32.totalorder %s88, %s89
      %p101 = scmp.eq.s32.totalorder %s23, 1
      %p102 = por %p100, %p101
      %p104 = scmp.ne.s32.totalorder %s89, %s103
      %p105 = scmp.eq.s32.totalorder %s23, 0
      %p106 = por %p104, %p105
      %s107 = ssub.s32 %s24, %s36
      %s108 = ssub.s32 %s25, %s32
      %s109 = sor.u32 %s107, %s108
      %p110 = scmp.eq.s32.totalorder %s109, 0
      %s112 = sadd.s32 %s111, 1
      %s113 = scalar_select %p110, %s111, %s112
      %p116 = pneg %p110
      %p117 = scmp.eq.s32.totalorder %s17, 1
      %p118 = por %p116, %p117
      %p119 = scmp.ne.s32.totalorder %s111, %s114
      %p120 = scmp.eq.s32.totalorder %s17, 0
      %p121 = por %p119, %p120
      %p122 = scmp.ne.s32.totalorder %s111, %s114
      %p123 = scmp.eq.s32.totalorder %s22, 1
      %p124 = por %p122, %p123
      %p125 = scmp.ne.s32.totalorder %s114, %s115
      %p126 = scmp.eq.s32.totalorder %s22, 0
      %p127 = por %p125, %p126
      %p128 = scmp.ne.s32.totalorder %s114, %s115
      %p129 = scmp.eq.s32.totalorder %s23, 1
      %p130 = por %p128, %p129
      %p132 = scmp.ne.s32.totalorder %s115, %s131
      %p133 = scmp.eq.s32.totalorder %s23, 0
      %p134 = por %p132, %p133
      %p135 = scmp.le.s32.totalorder 1, %s17
      %p136 = scmp.lt.s32.totalorder %s17, 3
      %p137 = pnand %p135, %p136
      %p138 = pneg %p137
      // Predicated region
      $region9: #{tpu_custom_call.1} parent=5 // pred_check
        _
      $region10: #{tpu_custom_call.1} parent=5 // pred_check_branch
        %140 = sbr.rel (%p137) target = $region12
      $region11: #{tpu_custom_call.1} parent=5 // pred_region
        %s141 = ssub.s32 %s17, 1
        // Predicated region
        $region13: #{tpu_custom_call.1} parent=11 // pred_check
          %p142 = pneg %p78
        $region14: #{tpu_custom_call.1} parent=11 // pred_check_branch
          %144 = sbr.rel (%p142) target = $region16
        $region15: #{tpu_custom_call.1} parent=11 // pred_region
          %s146 = ssub.s32 64, 64
          %147 = vsyncadd [#allocation5], %s146
          %s149 = sshll.u32 %s1, 4
          %s150 = int_to_ptr.vmem [resolvable:$true] %s149
          %152 = dma.vmem_to_smem %s150, 64, [#allocation6], [#allocation5]
        $region16: #{tpu_custom_call.1} parent=11 // pred_fallthru
          _
        // Predicated region
        $region17: #{tpu_custom_call.1} parent=11 // pred_check
          %p153 = pneg %p99
        $region18: #{tpu_custom_call.1} parent=11 // pred_check_branch
          %155 = sbr.rel (%p153) target = $region20
        $region19: #{tpu_custom_call.1} parent=11 // pred_region
          %s157 = ssub.s32 16, 16
          %158 = vsyncadd [#allocation8], %s157
          %s160 = sshll.u32 %s2, 4
          %s161 = int_to_ptr.vmem [resolvable:$true] %s160
          %163 = dma.vmem_to_smem %s161, 16, [#allocation7], [#allocation8]
        $region20: #{tpu_custom_call.1} parent=11 // pred_fallthru
          _
      $region12: #{tpu_custom_call.1} parent=5 // pred_fallthru
        _
      %p164 = scmp.lt.s32.totalorder %s17, 2
      // Predicated region
      $region21: #{tpu_custom_call.1} parent=5 // pred_check
        %p165 = pneg %p164
      $region22: #{tpu_custom_call.1} parent=5 // pred_check_branch
        %167 = sbr.rel (%p165) target = $region24
      $region23: #{tpu_custom_call.1} parent=5 // pred_region
        // Predicated region
        $region25: #{tpu_custom_call.1} parent=23 // pred_check
          %p168 = pneg %p51
        $region26: #{tpu_custom_call.1} parent=23 // pred_check_branch
          %170 = sbr.rel (%p168) target = $region28
        $region27: #{tpu_custom_call.1} parent=23 // pred_region
          %s171 = sand.u32 %s41, 1
          %s172 = scalar_lea.sflag [#allocation3], %s171
          %s173 = sand.u32 %s41, 1
          %s174 = smul.addr %s173, 8
          %s175 = scalar_lea.vmem [#allocation2], %s174
          %s176 = smul.u32 2, %s25
          %s178 = ssub.s32 128, 128
          %179 = vsyncadd %s172, %s178
          %s180 = smul.addr %s24, 2
          %s181 = sadd.s32 %s176, %s180
          %s182 = smul.addr %s181, 64
          %s183 = scalar_lea.hbm %s0, %s182
          %s185 = sshll.u32 %s175, 4
          %s186 = int_to_ptr.vmem [resolvable:$true] %s185
          %188 = dma.hbm_to_vmem [thread:$0]  %s183, 128, %s186, %s172
        $region28: #{tpu_custom_call.1} parent=23 // pred_fallthru
          _
      $region24: #{tpu_custom_call.1} parent=5 // pred_fallthru
        _
      %p189 = scmp.le.s32.totalorder 1, %s17
      %p190 = scmp.lt.s32.totalorder %s17, 3
      %p191 = pnand %p189, %p190
      %p192 = pneg %p191
      // Predicated region
      $region29: #{tpu_custom_call.1} parent=5 // pred_check
        _
      $region30: #{tpu_custom_call.1} parent=5 // pred_check_branch
        %194 = sbr.rel (%p191) target = $region32
      $region31: #{tpu_custom_call.1} parent=5 // pred_region
        %s195 = ssub.s32 %s17, 1
        %s196 = sand.u32 %s44, 1
        %s197 = scalar_lea.sflag [#allocation3], %s196
        %s198 = sand.u32 %s44, 1
        %s199 = smul.addr %s198, 8
        %s200 = scalar_lea.vmem [#allocation2], %s199
        // Predicated region
        $region33: #{tpu_custom_call.1} parent=31 // pred_check
          %p201 = pneg %p57
        $region34: #{tpu_custom_call.1} parent=31 // pred_check_branch
          %203 = sbr.rel (%p201) target = $region36
        $region35: #{tpu_custom_call.1} parent=31 // pred_region
          %204 = dma.done %s197, 128
        $region36: #{tpu_custom_call.1} parent=31 // pred_fallthru
          _
        // Predicated region
        $region37: #{tpu_custom_call.1} parent=31 // pred_check
          %p205 = pneg %p78
        $region38: #{tpu_custom_call.1} parent=31 // pred_check_branch
          %207 = sbr.rel (%p205) target = $region40
        $region39: #{tpu_custom_call.1} parent=31 // pred_region
          %208 = dma.done [#allocation5], 64
        $region40: #{tpu_custom_call.1} parent=31 // pred_fallthru
          _
        // Predicated region
        $region41: #{tpu_custom_call.1} parent=31 // pred_check
          %p209 = pneg %p99
        $region42: #{tpu_custom_call.1} parent=31 // pred_check_branch
          %211 = sbr.rel (%p209) target = $region44
        $region43: #{tpu_custom_call.1} parent=31 // pred_region
          %212 = dma.done [#allocation8], 16
        $region44: #{tpu_custom_call.1} parent=31 // pred_fallthru
          _
        %213 = sfence
        %s214 = sand.u32 %s44, 1
        %s215 = scalar_lea.sflag [#allocation3], %s214
        %s216 = sand.u32 %s44, 1
        %s217 = smul.addr %s216, 8
        %s218 = scalar_lea.vmem [#allocation2], %s217
        %p219 = pneg %p57
        %p220 = pneg %p54
        %p221 = pneg %p78
        %p222 = pneg %p75
        %p223 = pneg %p99
        %p224 = pneg %p96
        %p225 = pneg %p127
        %p226 = pneg %p124
        %s227 = sand.u32 %s114, 1
        %s228 = scalar_lea.sflag [#allocation4], %s227
        %s229 = sand.u32 %s114, 1
        %s230 = smul.addr %s229, 4
        %s231 = scalar_lea.vmem [#allocation9], %s230
        %s232 = smul.u32 2, %s27
        %s233 = smul.u32 2, %s27
        %v234 = vld [vmem:[%s200] sm:$0xff]
        %s235 = sld [smem:[#allocation6]]
        %s236 = sld [smem:[#allocation6 + $0x1]]
        %s237 = sld [smem:[#allocation6 + $0x80]]
        %s238 = sld [smem:[#allocation6 + $0x81]]
        %s239 = sld [smem:[#allocation6 + $0x100]]
        %s240 = sld [smem:[#allocation6 + $0x101]]
        %s241 = sld [smem:[#allocation6 + $0x180]]
        %s242 = sld [smem:[#allocation6 + $0x181]]
        %s243 = sld [smem:[#allocation7]]
        %s244 = sld [smem:[#allocation7 + $0x1]]
        %v245 = vstv %s235
        %v246 = vmul.f32 %v234, %v245
        %v247 = vstv %s237
        %v248 = vmul.f32 %v234, %v247
        %v250 = vrot.slane %v248, 5
        %v251 = vrot.slane %v250, 4
        %v253 = vadd.f32 %v246, %v251
        %v254 = vstv %s239
        %v255 = vmul.f32 %v234, %v254
        %v257 = vrot.slane %v255, 6
        %v258 = vrot.slane %v257, 4
        %v260 = vadd.f32 %v253, %v258
        %v261 = vstv %s241
        %v262 = vmul.f32 %v234, %v261
        %v264 = vrot.slane %v262, 7
        %v265 = vrot.slane %v264, 4
        %v267 = vadd.f32 %v260, %v265
        %v268 = vstv %s243
        %v269 = vadd.f32 %v267, %v268
        %v270 = vstv %s236
        %v271 = vmul.f32 %v234, %v270
        %v272 = vstv %s238
        %v273 = vmul.f32 %v234, %v272
        %v275 = vrot.slane %v273, 5
        %v276 = vrot.slane %v275, 4
        %v278 = vadd.f32 %v271, %v276
        %v279 = vstv %s240
        %v280 = vmul.f32 %v234, %v279
        %v282 = vrot.slane %v280, 6
        %v283 = vrot.slane %v282, 4
        %v285 = vadd.f32 %v278, %v283
        %v286 = vstv %s242
        %v287 = vmul.f32 %v234, %v286
        %v289 = vrot.slane %v287, 7
        %v290 = vrot.slane %v289, 4
        %v292 = vadd.f32 %v285, %v290
        %v293 = vstv %s244
        %v294 = vadd.f32 %v292, %v293
        %v296 = vlaneseq
        %v297 = vshrl.u32 %v296, 7
        %v298 = vsub.s32 0, %v297
        %v299 = vrot.slane %v269, %v298
        %v300 = vlaneseq
        %v301 = vshrl.u32 %v300, 7
        %v302 = vsub.s32 4, %v301
        %v303 = vrot.slane %v269, %v302
        %v307 = vlaneseq
        %v308 = vshrl.u32 %v307, 7
        %v309 = vsub.s32 0, %v308
        %v310 = vrot.slane %v294, %v309
        %v311 = vlaneseq
        %v312 = vshrl.u32 %v311, 7
        %v313 = vsub.s32 4, %v312
        %v314 = vrot.slane %v294, %v313
        %vm317 = vcmask 1040384
        %v318 = vsel %vm317, %v299, %v310
        %v319 = vsel %vm317, %v303, %v314
        %v322 = vcombine.low %v318, %v319
        %v324 = vunpack.c.l.s4 1983009808
        %v325 = vunpack.c.0.s8 %v324
        %v326 = vlaneseq
        %v327 = vshrl.u32 %v326, 7
        %v328 = vsub.s32 %v325, %v327
        %v329 = vrot.slane %v322, %v328
        %331 = vst [vmem:[%s231] sm:$0xf] %v329
        %s332 = sand.u32 %s114, 1
        %s333 = scalar_lea.sflag [#allocation4], %s332
        %s334 = sand.u32 %s114, 1
        %s335 = smul.addr %s334, 4
        %s336 = scalar_lea.vmem [#allocation9], %s335
        // Predicated region
        $region45: #{tpu_custom_call.1} parent=31 // pred_check
          %p337 = pneg %p124
        $region46: #{tpu_custom_call.1} parent=31 // pred_check_branch
          %339 = sbr.rel (%p337) target = $region48
        $region47: #{tpu_custom_call.1} parent=31 // pred_region
          %s340 = smul.u32 2, %s27
          %s342 = ssub.s32 64, 64
          %343 = vsyncadd %s333, %s342
          %s344 = smul.addr %s26, 2
          %s345 = sadd.s32 %s340, %s344
          %s346 = smul.addr %s345, 32
          %s347 = scalar_lea.hbm %s3, %s346
          %s349 = sshll.u32 %s336, 4
          %s350 = int_to_ptr.vmem [resolvable:$true] %s349
          %352 = dma.vmem_to_hbm [thread:$0]  %s350, 64, %s347, %s333
        $region48: #{tpu_custom_call.1} parent=31 // pred_fallthru
          _
      $region32: #{tpu_custom_call.1} parent=5 // pred_fallthru
        _
      %p353 = scmp.le.s32.totalorder 2, %s17
      // Predicated region
      $region49: #{tpu_custom_call.1} parent=5 // pred_check
        %p354 = pneg %p353
      $region50: #{tpu_custom_call.1} parent=5 // pred_check_branch
        %356 = sbr.rel (%p354) target = $region52
      $region51: #{tpu_custom_call.1} parent=5 // pred_region
        %s357 = ssub.s32 %s17, 2
        // Predicated region
        $region53: #{tpu_custom_call.1} parent=51 // pred_check
          %p358 = pneg %p130
        $region54: #{tpu_custom_call.1} parent=51 // pred_check_branch
          %360 = sbr.rel (%p358) target = $region56
        $region55: #{tpu_custom_call.1} parent=51 // pred_region
          %s361 = sand.u32 %s115, 1
          %s362 = scalar_lea.sflag [#allocation4], %s361
          %s363 = sand.u32 %s115, 1
          %s364 = smul.addr %s363, 4
          %s365 = scalar_lea.vmem [#allocation9], %s364
          %366 = dma.done %s362, 64
        $region56: #{tpu_custom_call.1} parent=51 // pred_fallthru
          _
      $region52: #{tpu_custom_call.1} parent=5 // pred_fallthru
        _
    $region6: #{tpu_custom_call.1} parent=1 // loop_footer
      %s21 = sadd.s32 1, %s17
    $region7: #{tpu_custom_call.1} parent=1 // loop_footer_branch
      %16 = sbr.rel target = $region3
    $region8: #{tpu_custom_call.1} parent=1 // loop_exit
      _
    %367 = vsyncpa [#allocation3], 1
    %s368 = scalar_lea.sflag [#allocation3], 1
    %369 = vsyncpa %s368, 1
    %370 = vsyncpa [#allocation4], 1
    %s371 = scalar_lea.sflag [#allocation4], 1
    %372 = vsyncpa %s371, 1
    %373 = vsyncpa [#allocation5], 1
    %s374 = scalar_lea.sflag [#allocation5], 1
    %375 = vsyncpa %s374, 1
    %376 = vsyncpa [#allocation8], 1

</llo_original>
